<compile_context>
chip_gen: v7x
topology: tpu7x:2x2x1
jax: 0.10.0
libtpu: 0.0.40
codegen_flags: <defaults>
</compile_context>

<pallas_src>
import math

import jax
import jax.numpy as jnp
from jax.experimental import pallas as pl
from jax.experimental.pallas import tpu as pltpu


def recommendation_kernel(item_ref, seq_ref, wd_ref, bd_ref, out_ref):
    item = item_ref[...]                      # (TB, 1, D)  input dtype
    seq = seq_ref[...]                        # (TB, L, D)  input dtype
    wd = wd_ref[...]                          # (1, D)      input dtype (w1 - w0)
    bd = bd_ref[0]                            # SMEM f32 scalar (b1 - b0)

    d = seq.shape[-1]
    scale = 1.0 / math.sqrt(d)

    # Attention scores: item attends over the sequence (scaled dot-product).
    # Multiply in the input dtype; accumulate the D-reduction in f32.
    scores = jnp.sum(item * seq, axis=-1, dtype=jnp.float32) * scale   # (TB, L)
    # Projection of every sequence element onto the class-difference direction.
    proj = jnp.sum(seq * wd, axis=-1, dtype=jnp.float32)               # (TB, L)

    # Softmax-weighted average of `proj` over L (max-subtracted, exact divide).
    m = jnp.max(scores, axis=-1, keepdims=True)                        # (TB, 1)
    e = jnp.exp(scores - m)                                            # (TB, L)
    denom = jnp.sum(e, axis=-1, keepdims=True)                         # (TB, 1)
    num = jnp.sum(e * proj, axis=-1, keepdims=True)                    # (TB, 1)

    # Two-class log_softmax of F.linear(x, W, b):
    #   t = logit_1 - logit_0 ;  out = [-softplus(t), t - softplus(t)]
    t = num / denom + bd                                               # (TB, 1)
    # Stable softplus via plain log (log1p avoided for lowering safety; the
    # 1-ulp difference is far below test tolerance).
    sp = jnp.maximum(t, 0.0) + jnp.log(1.0 + jnp.exp(-jnp.abs(t)))
    out = jnp.concatenate([-sp, t - sp], axis=-1)                      # (TB, 2)
    out_ref[...] = out.astype(out_ref.dtype)


def _chip_budget():
    """(seq-tile target bytes, vmem_limit_bytes) tuned per TPU generation."""
    kind = ""
    try:
        kind = jax.devices()[0].device_kind.lower()
    except Exception:
        pass
    if "v7" in kind or "7x" in kind:
        return 3 << 20, 48 << 20        # 64 MiB VMEM/TC: leave headroom
    if "v6" in kind:
        return 12 << 20, 96 << 20       # 128 MiB VMEM, 1.4 TB/s HBM
    if "v5e" in kind or "v5 lite" in kind or "v5lite" in kind:
        return 12 << 20, 96 << 20       # 128 MiB VMEM, slowest HBM: big tiles
    return 6 << 20, 64 << 20            # conservative default


def _pick_block_b(B, L, D, itemsize, target_bytes):
    """Batch tile: biggest tile within the per-chip budget, >= 2 grid steps
    when the batch allows it (v7x megacore), multiple of 8 (sublane/out spec)."""
    if B < 16:
        return B                         # too small to tile; single step
    row_bytes = max(1, L * D * itemsize)
    rows = max(8, target_bytes // row_bytes)
    rows = min(rows, B // 2)             # keep >= 2 grid steps
    return max(8, (rows // 8) * 8)


def recommendation_forward(item_emb, sequence_emb, weight, bias, *, block_b=None):
    """item_emb: (B, 1, D)  sequence_emb: (B, L, D)  weight: (2, D)  bias: (2,)"""
    B, _, D = item_emb.shape
    L = sequence_emb.shape[1]
    in_dt = sequence_emb.dtype

    # Class-difference head parameters (2-class simplification).
    wd = (weight[1] - weight[0]).astype(in_dt).reshape(1, D)
    bd = (bias[1] - bias[0]).astype(jnp.float32).reshape(1)

    target_bytes, vmem_limit = _chip_budget()
    if block_b is None:
        block_b = _pick_block_b(B, L, D, jnp.dtype(in_dt).itemsize, target_bytes)
    tb = int(block_b)
    grid = (pl.cdiv(B, tb),)

    return pl.pallas_call(
        recommendation_kernel,
        out_shape=jax.ShapeDtypeStruct((B, 2), jnp.float32),
        grid_spec=pltpu.PrefetchScalarGridSpec(
            num_scalar_prefetch=0,
            grid=grid,
            in_specs=[
                pl.BlockSpec((tb, 1, D), lambda i: (i, 0, 0)),     # item tile
                pl.BlockSpec((tb, L, D), lambda i: (i, 0, 0)),     # seq tile
                pl.BlockSpec((1, D), lambda i: (0, 0)),            # resident w1-w0
                pl.BlockSpec(memory_space=pltpu.MemorySpace.SMEM),  # b1-b0 scalar
            ],
            out_specs=pl.BlockSpec((tb, 2), lambda i: (i, 0)),
        ),
        compiler_params=pltpu.CompilerParams(
            dimension_semantics=("parallel",),       # megacore sharding on v7x
            vmem_limit_bytes=vmem_limit,
        ),
    )(item_emb, sequence_emb, wd, bd)


def recommendation_reference(item_emb, sequence_emb, weight, bias):
    """Pure-JAX reference for correctness checking."""
    D = sequence_emb.shape[-1]
    item = item_emb.astype(jnp.float32)
    seq = sequence_emb.astype(jnp.float32)
    scores = jnp.sum(item * seq, axis=-1) / math.sqrt(D)                # (B, L)
    attn = jax.nn.softmax(scores, axis=-1)
    x = jnp.sum(attn[:, :, None] * seq, axis=1)                         # (B, D)
    logits = x @ weight.T + bias                                        # (B, 2)
    return jax.nn.log_softmax(logits, axis=-1)


if __name__ == "__main__":
    L, D = 8, 32  # sequence length, in_features (latent dim)

    key = jax.random.PRNGKey(0)
    k_item, k_seq, k_w, k_b, k2, k3 = jax.random.split(key, 6)

    # Parameter init mirroring the module: uniform(-stdv, stdv), stdv = 1/sqrt(D).
    stdv = 1.0 / math.sqrt(D)
    weight = jax.random.uniform(k_w, (2, D), jnp.float32, -stdv, stdv)
    bias = jax.random.uniform(k_b, (2,), jnp.float32, -stdv, stdv)

    # 1) Small batch -> single grid step (tb == B).
    B = 2
    item_emb = jax.random.normal(k_item, (B, 1, D), jnp.float32)
    sequence_emb = jax.random.normal(k_seq, (B, L, D), jnp.float32)
    out = jax.block_until_ready(
        recommendation_forward(item_emb, sequence_emb, weight, bias))
    ref = recommendation_reference(item_emb, sequence_emb, weight, bias)
    assert out.shape == (B, 2), out.shape
    assert jnp.allclose(out, ref, atol=1e-4, rtol=1e-4), (out, ref)

    # 2) Larger batch -> multi-step batch grid with resident head weights.
    B2 = 256
    item2 = jax.random.normal(k2, (B2, 1, D), jnp.float32)
    seq2 = jax.random.normal(k3, (B2, L, D), jnp.float32)
    out2 = jax.block_until_ready(
        recommendation_forward(item2, seq2, weight, bias))
    ref2 = recommendation_reference(item2, seq2, weight, bias)
    assert out2.shape == (B2, 2), out2.shape
    assert jnp.allclose(out2, ref2, atol=1e-4, rtol=1e-4), (out2, ref2)

    # 3) bf16 inputs: multiply in bf16, accumulate reductions in f32.
    B3 = 16
    item3 = jax.random.normal(k2, (B3, 1, D), jnp.float32).astype(jnp.bfloat16)
    seq3 = jax.random.normal(k3, (B3, L, D), jnp.float32).astype(jnp.bfloat16)
    out3 = jax.block_until_ready(
        recommendation_forward(item3, seq3, weight, bias))
    ref3 = recommendation_reference(item3, seq3, weight, bias)
    assert out3.shape == (B3, 2), out3.shape
    assert jnp.allclose(out3, ref3, atol=5e-2, rtol=5e-2), (out3, ref3)

    print("KERNEL_OK")
</pallas_src>

<mosaic_0001>
module attributes {stable_mosaic.version = 11 : i64} {
  func.func @recommendation_kernel(%arg0: i32, %arg1: memref<2x1x32xf32, #tpu.memory_space<vmem>>, %arg2: memref<2x8x32xf32, #tpu.memory_space<vmem>>, %arg3: memref<1x32xf32, #tpu.memory_space<vmem>>, %arg4: memref<1xf32, #tpu.memory_space<smem>>, %arg5: memref<2x2xf32, #tpu.memory_space<vmem>>) attributes {dimension_semantics = [#tpu.dimension_semantics<parallel>], iteration_bounds = array<i64: 1>, scalar_prefetch = 0 : i64, scratch_operands = 0 : i64, tpu.core_type = #tpu.core_type<tc>, window_params = [{transform_indices = @transform_0, window_bounds = array<i64: 2, 1, 32>}, {transform_indices = @transform_1, window_bounds = array<i64: 2, 8, 32>}, {pipeline_mode = #tpu.pipeline_mode<synchronous>, transform_indices = @transform_2, window_bounds = array<i64: 1, 32>}, {transform_indices = @transform_3, window_bounds = array<i64: 1>}, {transform_indices = @transform_4, window_bounds = array<i64: 2, 2>}]} {
    %c0 = arith.constant 0 : index
    %c0_0 = arith.constant 0 : index
    %c0_1 = arith.constant 0 : index
    %0 = vector.load %arg1[%c0, %c0_0, %c0_1] : memref<2x1x32xf32, #tpu.memory_space<vmem>>, vector<2x1x32xf32>
    %c0_2 = arith.constant 0 : index
    %c0_3 = arith.constant 0 : index
    %c0_4 = arith.constant 0 : index
    %1 = vector.load %arg2[%c0_2, %c0_3, %c0_4] : memref<2x8x32xf32, #tpu.memory_space<vmem>>, vector<2x8x32xf32>
    %c0_5 = arith.constant 0 : index
    %c0_6 = arith.constant 0 : index
    %2 = vector.load %arg3[%c0_5, %c0_6] : memref<1x32xf32, #tpu.memory_space<vmem>>, vector<1x32xf32>
    %c0_7 = arith.constant 0 : index
    %3 = memref.load %arg4[%c0_7] : memref<1xf32, #tpu.memory_space<smem>>
    %4 = vector.broadcast %0 : vector<2x1x32xf32> to vector<2x8x32xf32>
    %5 = arith.mulf %4, %1 : vector<2x8x32xf32>
    %cst = arith.constant dense<0.000000e+00> : vector<2x8xf32>
    %6 = vector.multi_reduction <add>, %5, %cst [2] : vector<2x8x32xf32> to vector<2x8xf32>
    %cst_8 = arith.constant 0.176776692 : f32
    %7 = vector.broadcast %cst_8 : f32 to vector<2x8xf32>
    %8 = arith.mulf %6, %7 : vector<2x8xf32>
    %9 = vector.shape_cast %2 : vector<1x32xf32> to vector<1x1x32xf32>
    %10 = vector.broadcast %9 : vector<1x1x32xf32> to vector<2x8x32xf32>
    %11 = arith.mulf %1, %10 : vector<2x8x32xf32>
    %cst_9 = arith.constant dense<0.000000e+00> : vector<2x8xf32>
    %12 = vector.multi_reduction <add>, %11, %cst_9 [2] : vector<2x8x32xf32> to vector<2x8xf32>
    %cst_10 = arith.constant dense<0xFF800000> : vector<2xf32>
    %13 = vector.multi_reduction <maximumf>, %8, %cst_10 [1] : vector<2x8xf32> to vector<2xf32>
    %14 = vector.shape_cast %13 : vector<2xf32> to vector<2x1xf32>
    %15 = vector.broadcast %14 : vector<2x1xf32> to vector<2x8xf32>
    %16 = arith.subf %8, %15 : vector<2x8xf32>
    %17 = math.exp %16 : vector<2x8xf32>
    %cst_11 = arith.constant dense<0.000000e+00> : vector<2xf32>
    %18 = vector.multi_reduction <add>, %17, %cst_11 [1] : vector<2x8xf32> to vector<2xf32>
    %19 = vector.shape_cast %18 : vector<2xf32> to vector<2x1xf32>
    %20 = arith.mulf %17, %12 : vector<2x8xf32>
    %cst_12 = arith.constant dense<0.000000e+00> : vector<2xf32>
    %21 = vector.multi_reduction <add>, %20, %cst_12 [1] : vector<2x8xf32> to vector<2xf32>
    %22 = vector.shape_cast %21 : vector<2xf32> to vector<2x1xf32>
    %23 = arith.divf %22, %19 : vector<2x1xf32>
    %24 = vector.broadcast %3 : f32 to vector<2x1xf32>
    %25 = arith.addf %23, %24 : vector<2x1xf32>
    %cst_13 = arith.constant 0.000000e+00 : f32
    %26 = vector.broadcast %cst_13 : f32 to vector<2x1xf32>
    %27 = arith.maximumf %25, %26 : vector<2x1xf32>
    %28 = math.absf %25 : vector<2x1xf32>
    %cst_14 = arith.constant 0.000000e+00 : f32
    %29 = vector.broadcast %cst_14 : f32 to vector<2x1xf32>
    %30 = arith.subf %29, %28 : vector<2x1xf32>
    %31 = math.exp %30 : vector<2x1xf32>
    %cst_15 = arith.constant 1.000000e+00 : f32
    %32 = vector.broadcast %cst_15 : f32 to vector<2x1xf32>
    %33 = arith.addf %32, %31 : vector<2x1xf32>
    %34 = math.log %33 : vector<2x1xf32>
    %35 = arith.addf %27, %34 : vector<2x1xf32>
    %cst_16 = arith.constant 0.000000e+00 : f32
    %36 = vector.broadcast %cst_16 : f32 to vector<2x1xf32>
    %37 = arith.subf %36, %35 : vector<2x1xf32>
    %38 = arith.subf %25, %35 : vector<2x1xf32>
    %39 = tpu.concatenate %37, %38 in 1 : vector<2x1xf32>, vector<2x1xf32> -> vector<2x2xf32>
    %c0_17 = arith.constant 0 : index
    %c0_18 = arith.constant 0 : index
    %40 = vector.load %arg5[%c0_17, %c0_18] : memref<2x2xf32, #tpu.memory_space<vmem>>, vector<2x2xf32>
    tpu.vector_store %arg5[%c0_17, %c0_18], %39 {strides = array<i32>} : memref<2x2xf32, #tpu.memory_space<vmem>>, vector<2x2xf32>,
    return
  }
  func.func @transform_0(%arg0: i32) -> (i32, i32, i32) {
    %c0_i32 = arith.constant 0 : i32
    %c0_i32_0 = arith.constant 0 : i32
    %c0_i32_1 = arith.constant 0 : i32
    return %arg0, %c0_i32, %c0_i32_0 : i32, i32, i32
  }
  func.func @transform_1(%arg0: i32) -> (i32, i32, i32) {
    %c0_i32 = arith.constant 0 : i32
    %c0_i32_0 = arith.constant 0 : i32
    %c0_i32_1 = arith.constant 0 : i32
    return %arg0, %c0_i32, %c0_i32_0 : i32, i32, i32
  }
  func.func @transform_2(%arg0: i32) -> (i32, i32) {
    %c0_i32 = arith.constant 0 : i32
    %c0_i32_0 = arith.constant 0 : i32
    %c0_i32_1 = arith.constant 0 : i32
    return %c0_i32, %c0_i32_0 : i32, i32
  }
  func.func @transform_3(%arg0: i32) -> i32 {
    %c0_i32 = arith.constant 0 : i32
    %c0_i32_0 = arith.constant 0 : i32
    return %c0_i32 : i32
  }
  func.func @transform_4(%arg0: i32) -> (i32, i32) {
    %c0_i32 = arith.constant 0 : i32
    %c0_i32_0 = arith.constant 0 : i32
    return %arg0, %c0_i32 : i32, i32
  }
}

</mosaic_0001>

<llo_original>
// kernel: tpu_custom_call.1
$region0: #{tpu_custom_call.1}
  #allocation0 [shape = 'u32[]', space=smem, size = 0x4, offset = 0x4, fixed_abs, tag = 'smem constant byte address 0x4 - core index']
  #allocation1 [shape = 'u32[144,128]{1,0:T(1,128)}', space=vmem, size = 0x12000, scoped, tag = 'internal scratch']
  #allocation2 [shape = 'f32[1]{0:T(128)S(6)}', space=smem, size = 0x200, scoped, tag = 'scoped memory for tpu_custom_call.1']
  %s0 = inlined_call_operand.hbm [shape: f32[2,1,32], index: 0, kind: input, shape index: {}]
  %s1 = inlined_call_operand.hbm [shape: f32[2,8,32], index: 1, kind: input, shape index: {}]
  %s2 = inlined_call_operand.hbm [shape: f32[1,32], index: 2, kind: input, shape index: {}]
  %s3 = inlined_call_operand.<no memory space> [shape: f32[1], index: 3, kind: input, shape index: {}]
  %s4 = inlined_call_operand.hbm [shape: f32[2,2], index: 4, kind: output, shape index: {}]
  %s5 = sld [smem:[#allocation0]]
  $region38: #{tpu_custom_call.1} parent=0
    _
  %s7 = ssub.s32 1, %s5
  %s8 = scalar_select 0, %s7, %s5
  %9 = sst [smem:[#allocation2]] %s3
  $region1: #{tpu_custom_call.1} parent=0
    #allocation3 [shape = 'u8[1024]{0}', space=vmem, size = 0x400, scoped, tag = 'input window, operand 0, single buffered']
    #allocation4 [shape = 's32[1]{0}', space=sflag, size = 0x4, scoped, tag = 'scoped memory for tpu_custom_call.1']
    #allocation5 [shape = 's32[1]{0}', space=sflag, size = 0x4, scoped, tag = 'scoped memory for tpu_custom_call.1']
    #allocation6 [shape = 'u8[8192]{0}', space=vmem, size = 0x2000, scoped, tag = 'input window, operand 1, single buffered']
    #allocation7 [shape = 's32[1]{0}', space=sflag, size = 0x4, scoped, tag = 'scoped memory for tpu_custom_call.1']
    #allocation8 [shape = 'u8[512]{0}', space=vmem, size = 0x400, scoped, tag = 'input window, operand 2, single buffered']
    #allocation9 [shape = 'u8[1024]{0}', space=vmem, size = 0x400, scoped, tag = 'output window, operand 0, single buffered']
    %10 = vsyncpa [#allocation4], 0
    %11 = vsyncpa [#allocation7], 0
    %12 = vsyncpa [#allocation5], 0
    // Predicated region
    $region2: #{tpu_custom_call.1} parent=1 // pred_check
      _
    $region3: #{tpu_custom_call.1} parent=1 // pred_check_branch
      %14 = sbr.rel (0) target = $region5
    $region4: #{tpu_custom_call.1} parent=1 // pred_region
      %s16 = ssub.s32 32, 32
      %17 = vsyncadd [#allocation4], %s16
      %s18 = sshll.u32 [#allocation3], 4
      %s19 = int_to_ptr.vmem [resolvable:$true] %s18
      %24 = dma.hbm_to_vmem [thread:$0]  %s0, 32, %s19, [#allocation4], 16, 16, 1
    $region5: #{tpu_custom_call.1} parent=1 // pred_fallthru
      _
    // Predicated region
    $region6: #{tpu_custom_call.1} parent=1 // pred_check
      _
    $region7: #{tpu_custom_call.1} parent=1 // pred_check_branch
      %26 = sbr.rel (0) target = $region9
    $region8: #{tpu_custom_call.1} parent=1 // pred_region
      %s28 = ssub.s32 256, 256
      %29 = vsyncadd [#allocation7], %s28
      %s30 = sshll.u32 [#allocation6], 4
      %s31 = int_to_ptr.vmem [resolvable:$true] %s30
      %36 = dma.hbm_to_vmem [thread:$0]  %s1, 256, %s31, [#allocation7], 128, 128, 8
    $region9: #{tpu_custom_call.1} parent=1 // pred_fallthru
      _
    // Predicated region
    $region10: #{tpu_custom_call.1} parent=1 // pred_check
      _
    $region11: #{tpu_custom_call.1} parent=1 // pred_check_branch
      %38 = sbr.rel (0) target = $region13
    $region12: #{tpu_custom_call.1} parent=1 // pred_region
      %s40 = ssub.s32 16, 16
      %41 = vsyncadd [#allocation7], %s40
      %s43 = sshll.u32 [#allocation8], 4
      %s44 = int_to_ptr.vmem [resolvable:$true] %s43
      %46 = dma.hbm_to_vmem [thread:$0]  %s2, 16, %s44, [#allocation7]
    $region13: #{tpu_custom_call.1} parent=1 // pred_fallthru
      _
    // Predicated region
    $region14: #{tpu_custom_call.1} parent=1 // pred_check
      _
    $region15: #{tpu_custom_call.1} parent=1 // pred_check_branch
      %48 = sbr.rel (0) target = $region17
    $region16: #{tpu_custom_call.1} parent=1 // pred_region
      _
    $region17: #{tpu_custom_call.1} parent=1 // pred_fallthru
      _
    // Predicated region
    $region18: #{tpu_custom_call.1} parent=1 // pred_check
      _
    $region19: #{tpu_custom_call.1} parent=1 // pred_check_branch
      %50 = sbr.rel (0) target = $region21
    $region20: #{tpu_custom_call.1} parent=1 // pred_region
      %51 = dma.done [#allocation4], 32
    $region21: #{tpu_custom_call.1} parent=1 // pred_fallthru
      _
    // Predicated region
    $region22: #{tpu_custom_call.1} parent=1 // pred_check
      _
    $region23: #{tpu_custom_call.1} parent=1 // pred_check_branch
      %53 = sbr.rel (0) target = $region25
    $region24: #{tpu_custom_call.1} parent=1 // pred_region
      %54 = dma.done [#allocation7], 256
    $region25: #{tpu_custom_call.1} parent=1 // pred_fallthru
      _
    // Predicated region
    $region26: #{tpu_custom_call.1} parent=1 // pred_check
      _
    $region27: #{tpu_custom_call.1} parent=1 // pred_check_branch
      %56 = sbr.rel (0) target = $region29
    $region28: #{tpu_custom_call.1} parent=1 // pred_region
      %57 = dma.done [#allocation7], 16
    $region29: #{tpu_custom_call.1} parent=1 // pred_fallthru
      _
    %v58 = vld [vmem:[#allocation3] sm:$0x1]
    %v59 = vld [vmem:[#allocation3 + $0x1] sm:$0x1]
    %v60 = vld [vmem:[#allocation6] sm:$0xff]
    %v61 = vld [vmem:[#allocation6 + $0x8] sm:$0xff]
    %v62 = vld [vmem:[#allocation8] sm:$0x1]
    %s63 = sld [smem:[#allocation2]]
    %v66 = vlaneseq
    %v67 = vshrl.u32 %v66, 7
    %v68 = vsub.s32 0, %v67
    %v69 = vrot.slane %v58, %v68
    %v70 = vlaneseq
    %v71 = vshrl.u32 %v70, 7
    %v72 = vsub.s32 0, %v71
    %v73 = vrot.slane %v59, %v72
    %v76 = vmul.f32 %v69, %v60
    %v77 = vmul.f32 %v73, %v61
    %vm78 = vcmask 261120
    %v79 = vsel %vm78, %v76, 0.0
    %80 = vadd.xlane.f32.xlu0 %v79
    %v81 = vpop.xlane.xlu0 %80
    %v82 = vsel %vm78, %v77, 0.0
    %83 = vadd.xlane.f32.xlu0 %v82
    %v84 = vpop.xlane.xlu0 %83
    %v85 = vmul.f32 %v81, 0.17677669
    %v86 = vmul.f32 %v84, 0.17677669
    %v88 = vlaneseq
    %v89 = vshrl.u32 %v88, 7
    %v90 = vsub.s32 0, %v89
    %v91 = vrot.slane %v62, %v90
    %v93 = vmul.f32 %v60, %v91
    %v94 = vmul.f32 %v61, %v91
    %v95 = vsel %vm78, %v93, 0.0
    %96 = vadd.xlane.f32.xlu0 %v95
    %v97 = vpop.xlane.xlu0 %96
    %v98 = vsel %vm78, %v94, 0.0
    %99 = vadd.xlane.f32.xlu0 %v98
    %v100 = vpop.xlane.xlu0 %99
    %v103 = vlaneseq
    %v104 = vand.u32 %v103, 127
    %v105 = vlaneseq
    %v106 = vshrl.u32 %v105, 7
    %v107 = vsub.s32 %v104, %v106
    %v108 = vrot.slane %v85, %v107
    %v109 = vlaneseq
    %v110 = vshrl.u32 %v109, 7
    %v111 = vsub.s32 %v104, %v110
    %v112 = vrot.slane %v86, %v111
    %vm113 = vcmask 1041409
    %v114 = vsel %vm113, %v112, %v108
    %vm116 = vcmask 58368
    %v117 = vsel %vm116, %v114, -inf
    %118 = vmax.xlane.f32.xlu0 %v117
    %v119 = vpop.xlane.xlu0 %118
    %v121 = vlaneseq
    %v122 = vshrl.u32 %v121, 7
    %v123 = vsub.s32 0, %v122
    %v124 = vrot.slane %v119, %v123
    %v125 = vlaneseq
    %v126 = vshrl.u32 %v125, 7
    %v127 = vsub.s32 1, %v126
    %v128 = vrot.slane %v119, %v127
    %v131 = vsub.f32 %v85, %v124
    %v132 = vsub.f32 %v86, %v128
    %v133 = vmul.f32 %v131, 1.442695
    %v134 = vpow.pop %v133
    %v135 = vmul.f32 %v132, 1.442695
    %v136 = vpow.pop %v135
    %139 = vset.pattern.permute.xlu0 0
    %140 = vperm.xlu0 %139, %v134
    %v141 = vpop.permute.xlu0 %140
    %142 = vset.pattern.permute.xlu0 0
    %143 = vperm.xlu0 %142, %v136
    %v144 = vpop.permute.xlu0 %143
    %v145 = vlaneseq
    %v146 = vshrl.u32 %v145, 7
    %v147 = vsub.s32 %v104, %v146
    %v148 = vrot.slane %v141, %v147
    %v149 = vlaneseq
    %v150 = vshrl.u32 %v149, 7
    %v151 = vsub.s32 %v104, %v150
    %v152 = vrot.slane %v144, %v151
    %v153 = vsel %vm113, %v152, %v148
    %v155 = vsel %vm116, %v153, 0.0
    %156 = vadd.xlane.f32.xlu0 %v155
    %v157 = vpop.xlane.xlu0 %156
    %v158 = vmul.f32 %v134, %v97
    %v159 = vmul.f32 %v136, %v100
    %162 = vset.pattern.permute.xlu0 0
    %163 = vperm.xlu0 %162, %v158
    %v164 = vpop.permute.xlu0 %163
    %165 = vset.pattern.permute.xlu0 0
    %166 = vperm.xlu0 %165, %v159
    %v167 = vpop.permute.xlu0 %166
    %v168 = vlaneseq
    %v169 = vshrl.u32 %v168, 7
    %v170 = vsub.s32 %v104, %v169
    %v171 = vrot.slane %v164, %v170
    %v172 = vlaneseq
    %v173 = vshrl.u32 %v172, 7
    %v174 = vsub.s32 %v104, %v173
    %v175 = vrot.slane %v167, %v174
    %v176 = vsel %vm113, %v175, %v171
    %v178 = vsel %vm116, %v176, 0.0
    %179 = vadd.xlane.f32.xlu0 %v178
    %v180 = vpop.xlane.xlu0 %179
    %v181 = vrcp.pop %v157
    %v182 = vmul.f32 %v180, %v181
    %v183 = vstv %s63
    %v184 = vadd.f32 %v182, %v183
    %v185 = vmax.f32 %v184, 0.0
    %v186 = vand.u32 2147483647, %v184
    %v187 = vsub.f32 0.0, %v186
    %v188 = vmul.f32 %v187, 1.442695
    %v189 = vpow.pop %v188
    %v190 = vadd.f32 %v189, 1.0
    %v191 = vlog2.pop %v190
    %v192 = vmul.f32 %v191, 0.6931472
    %v193 = vadd.f32 %v185, %v192
    %v194 = vsub.f32 0.0, %v193
    %v195 = vsub.f32 %v184, %v193
    %vm196 = vcmask 7168
    %v197 = vsel %vm196, %v194, %v195
    %vm198 = vcmask 9216
    %199 = vst.msk [vmem:[#allocation9] sm:$0x3] %vm198, %v197
    // Predicated region
    $region30: #{tpu_custom_call.1} parent=1 // pred_check
      _
    $region31: #{tpu_custom_call.1} parent=1 // pred_check_branch
      %201 = sbr.rel (0) target = $region33
    $region32: #{tpu_custom_call.1} parent=1 // pred_region
      %s203 = ssub.s32 32, 32
      %204 = vsyncadd [#allocation5], %s203
      %s206 = sshll.u32 [#allocation9], 4
      %s207 = int_to_ptr.vmem [resolvable:$true] %s206
      %209 = dma.vmem_to_hbm [thread:$0]  %s207, 32, %s4, [#allocation5]
    $region33: #{tpu_custom_call.1} parent=1 // pred_fallthru
      _
    // Predicated region
    $region34: #{tpu_custom_call.1} parent=1 // pred_check
      _
    $region35: #{tpu_custom_call.1} parent=1 // pred_check_branch
      %211 = sbr.rel (0) target = $region37
    $region36: #{tpu_custom_call.1} parent=1 // pred_region
      %212 = dma.done [#allocation5], 32
    $region37: #{tpu_custom_call.1} parent=1 // pred_fallthru
      _
    %213 = vsyncpa [#allocation4], 1
    %214 = vsyncpa [#allocation7], 1
    %215 = vsyncpa [#allocation5], 1

</llo_original>
